<compile_context>
chip_gen: v5e
topology: v5e:2x2
jax: 0.10.0
libtpu: 0.0.40
codegen_flags: <defaults>
</compile_context>

<pallas_src>
import numpy as np
import jax
import jax.numpy as jnp
from jax.experimental import pallas as pl
from jax.experimental.pallas import tpu as pltpu

K = 3                            # neighbours (module default k=3)
LANE = 128                       # lane width
PAD_COORD = np.float32(1.0e6)    # padding coordinate -> huge distance, never picked


def _round_up(x, m):
    return ((x + m - 1) // m) * m


# --------------------------------------------------------------------------- #
# Pallas kernel
# --------------------------------------------------------------------------- #
def _knn_kernel(u_ref, f_ref, idx_ref, dist_ref, dacc_ref, iacc_ref):
    f_step = pl.program_id(1)
    tf = f_ref.shape[0]

    @pl.when(f_step == 0)
    def _init():
        dacc_ref[...] = jnp.full(dacc_ref.shape, jnp.inf, dacc_ref.dtype)
        iacc_ref[...] = jnp.zeros(iacc_ref.shape, iacc_ref.dtype)

    f = f_ref[...]                       # (TF, 2)  filled coords (sublane axis)
    u = u_ref[...]                       # (2, TU)  unfilled coords, lane-dense

    dr = f[:, 0:1] - u[0:1, :]           # (TF, TU)
    dc = f[:, 1:2] - u[1:2, :]
    sq = dr * dr + dc * dc               # exact squared distances (no cancellation)

    # (TF, 1) sublane iota; broadcasts into the compares (no full-block iota).
    row = jax.lax.broadcasted_iota(jnp.int32, (tf, 1), 0)
    base = f_step * tf                   # global index offset of this filled tile

    a0 = dacc_ref[0:1, :]
    a1 = dacc_ref[1:2, :]
    a2 = dacc_ref[2:3, :]
    j0 = iacc_ref[0:1, :]
    j1 = iacc_ref[1:2, :]
    j2 = iacc_ref[2:3, :]

    for pick in range(K):
        m = jnp.min(sq, axis=0, keepdims=True)                              # (1, TU)
        arg = jnp.min(jnp.where(sq == m, row, tf), axis=0, keepdims=True)   # stable argmin
        if pick < K - 1:                 # masking after the last pick is dead work
            sq = jnp.where(row == arg, jnp.inf, sq)
        g = arg + base                                                      # global idx

        # Insert (m, g) into the sorted running top-3.  Strict '<' keeps the
        # earlier (lower global index) entry ahead on ties, matching a stable
        # argsort over the full distance matrix.
        lt0 = m < a0
        lt1 = m < a1
        lt2 = m < a2
        na0 = jnp.where(lt0, m, a0)
        na1 = jnp.where(lt0, a0, jnp.where(lt1, m, a1))
        na2 = jnp.where(lt1, a1, jnp.where(lt2, m, a2))
        nj0 = jnp.where(lt0, g, j0)
        nj1 = jnp.where(lt0, j0, jnp.where(lt1, g, j1))
        nj2 = jnp.where(lt1, j1, jnp.where(lt2, g, j2))
        a0, a1, a2, j0, j1, j2 = na0, na1, na2, nj0, nj1, nj2

    dacc_ref[0:1, :] = a0
    dacc_ref[1:2, :] = a1
    dacc_ref[2:3, :] = a2
    iacc_ref[0:1, :] = j0
    iacc_ref[1:2, :] = j1
    iacc_ref[2:3, :] = j2

    @pl.when(f_step == pl.num_programs(1) - 1)
    def _finalize():
        # Lane-dense (K, TU) stores straight from the accumulators.
        idx_ref[0:1, :] = j0
        idx_ref[1:2, :] = j1
        idx_ref[2:3, :] = j2
        dist_ref[0:1, :] = jnp.sqrt(a0)
        dist_ref[1:2, :] = jnp.sqrt(a1)
        dist_ref[2:3, :] = jnp.sqrt(a2)


def knn_pallas(unfilled_xy, filled_xy, *, tile_u=256, tile_f=4096,
               vmem_limit_bytes=48 * 1024 * 1024):
    """Exact 3-NN of each row of unfilled_xy (Nu,2) against filled_xy (Nf,2).

    Returns (idx int32 (Nu,3), dist float32 (Nu,3)).

    Defaults (tile_u=256, tile_f=4096, vmem_limit 48 MiB) keep per-step
    temporaries near ~25 MiB: safe on v7x (64 MiB VMEM) and on v5e/v6e.  On
    v5e/v6e (128 MiB VMEM) a larger tile_f (8192) with vmem_limit_bytes ~96 MiB
    further amortizes per-step overhead.
    """
    nu = int(unfilled_xy.shape[0])
    nf = int(filled_xy.shape[0])
    if nu == 0:
        return jnp.zeros((0, K), jnp.int32), jnp.zeros((0, K), jnp.float32)
    if nf == 0:
        raise ValueError("knn_pallas: no filled points to query against")
    if nf < K:
        # Explicit guard: with fewer filled points than k the trailing
        # neighbours would be padding sentinels and `fill` would gather OOB.
        raise ValueError(f"knn_pallas: need at least k={K} filled points, got {nf}")

    tile_u = max(LANE, _round_up(tile_u, LANE))
    tile_f = max(LANE, _round_up(tile_f, LANE))
    tile_f = min(tile_f, _round_up(nf, LANE))

    # Make sure the "parallel" u axis has >= 2 tiles whenever possible so both
    # v7x TensorCores receive work (no effect on single-TC v5e/v6e).
    nu_lane = _round_up(nu, LANE)
    if nu_lane >= 2 * LANE:
        tile_u = min(tile_u, max(LANE, (nu_lane // 2) // LANE * LANE))
    else:
        tile_u = LANE

    nu_pad = _round_up(nu, tile_u)
    nf_pad = _round_up(nf, tile_f)

    # unfilled points transposed + lane-dense: (2, nu_pad)
    u_t = jnp.zeros((2, nu_pad), jnp.float32).at[:, :nu].set(
        jnp.transpose(unfilled_xy.astype(jnp.float32)))
    # filled points natural (row-major) layout: (nf_pad, 2), padding -> huge dist
    f_pad = jnp.full((nf_pad, 2), PAD_COORD, jnp.float32).at[:nf, :].set(
        filled_xy.astype(jnp.float32))

    grid = (nu_pad // tile_u, nf_pad // tile_f)
    idx_out, dist_out = pl.pallas_call(
        _knn_kernel,
        out_shape=(jax.ShapeDtypeStruct((K, nu_pad), jnp.int32),
                   jax.ShapeDtypeStruct((K, nu_pad), jnp.float32)),
        grid_spec=pltpu.PrefetchScalarGridSpec(
            num_scalar_prefetch=0,
            grid=grid,
            in_specs=[pl.BlockSpec((2, tile_u), lambda i, j: (0, i)),
                      pl.BlockSpec((tile_f, 2), lambda i, j: (j, 0))],
            out_specs=[pl.BlockSpec((K, tile_u), lambda i, j: (0, i)),
                       pl.BlockSpec((K, tile_u), lambda i, j: (0, i))],
            scratch_shapes=[pltpu.VMEM((K, tile_u), jnp.float32),
                            pltpu.VMEM((K, tile_u), jnp.int32)]),
        compiler_params=pltpu.CompilerParams(
            dimension_semantics=("parallel", "arbitrary"),
            vmem_limit_bytes=vmem_limit_bytes),
    )(u_t, f_pad)
    return jnp.transpose(idx_out[:, :nu]), jnp.transpose(dist_out[:, :nu])


# --------------------------------------------------------------------------- #
# Module glue (host / plain JAX), mirroring the torch module
# --------------------------------------------------------------------------- #
def norm_coord(coords, length=512):
    """[0, length] pixel coords -> [-1, 1] (same as the torch module)."""
    coords = coords / np.float32(length)
    coords = coords - np.float32(0.5)
    coords = coords * np.float32(2.0)
    return coords.astype(np.float32)


def find_idx(mask, k=K):
    """Pallas/JAX equivalent of MyTreeMultiRandom._find_idx."""
    assert k == K, "kernel is specialised for k=3 (module default)"
    m = np.asarray(mask)
    if m.ndim == 3:                      # module passes a (1, H, W) mask
        m = m[0]
    H, W = m.shape
    holed = np.ones((H, W), np.float32) * m.astype(np.float32)
    # TODO(synk): dynamic-shape nonzero has no Pallas/TPU equivalent; it stays
    # on the host, like the torch module's .nonzero() + numpy KDTree path.
    filled_idx = np.argwhere(holed != 0)      # (Nf, 2), row-major (torch.nonzero order)
    unfilled_idx = np.argwhere(holed == 0)    # (Nu, 2)
    if unfilled_idx.shape[0] == 0:
        return (np.zeros((0, k), np.int32), np.zeros((0, k), np.float32),
                filled_idx, unfilled_idx)
    if filled_idx.shape[0] < k:
        raise ValueError(f"find_idx: mask has fewer than k={k} filled pixels")
    filled_n = norm_coord(filled_idx.astype(np.float32), W)
    unfilled_n = norm_coord(unfilled_idx.astype(np.float32), W)
    idx, dist = knn_pallas(jnp.asarray(unfilled_n), jnp.asarray(filled_n))
    # TODO(synk): scipy KDTree returns float64 distances; we return float32.
    return np.asarray(idx), np.asarray(dist), filled_idx, unfilled_idx


def fill(holed_img, params, k=K, p=1):
    """Inverse-distance-weighted fill of the unfilled pixels (per batch)."""
    idx, dist, filled_idx, unfilled_idx = params
    if unfilled_idx.shape[0] == 0:
        return holed_img
    fi = jnp.asarray(filled_idx, jnp.int32)
    ui = jnp.asarray(unfilled_idx, jnp.int32)
    idx = jnp.asarray(idx, jnp.int32)
    dist = jnp.asarray(dist, jnp.float32)
    w = (1.0 / dist) ** p                                    # (Nu, k)
    sel = fi[idx]                                            # (Nu, k, 2)
    # TODO(synk): the torch code indexes holed_img[r, c] over dims (0, 1), which
    # is only meaningful for a 2-D / batch-1 image; we apply the intended
    # per-batch spatial gather/scatter instead.
    src = holed_img[:, sel[..., 0], sel[..., 1]]             # (B, Nu, k)
    vals = jnp.sum(src * w[None, :, :], axis=-1) / jnp.sum(w, axis=-1)[None, :]
    return holed_img.at[:, ui[:, 0], ui[:, 1]].set(vals)


def my_tree_multi_random_forward(coded, shutter_len, k=K, p=1):
    """Forward pass of MyTreeMultiRandom (4-channel / quad shutter case)."""
    b, c, h, w = coded.shape
    stacked = jnp.zeros((b, c, h, w), jnp.float32)
    unique_lengths = np.unique(np.asarray(shutter_len))
    for i, length in enumerate(unique_lengths):
        mask = (np.asarray(shutter_len) == length).astype(np.float32)   # (1, h, w)
        holed_img = coded[:, i, :, :] * jnp.asarray(mask)               # (b, h, w)
        params = find_idx(mask, k)
        filled_img = fill(holed_img, params, k, p)
        stacked = stacked.at[:, i, :, :].set(filled_img)
    return stacked


def shutter_length_quad(h, w):
    """MyTreeMultiRandom.shutter_length for a 4-channel coded input."""
    L = np.ones((h, w), np.float32)
    L[::4, 2::4] = 1.0
    L[1::4, 3::4] = 1.0
    L[::4, ::4] = 2.0
    L[1::4, 1::4] = 2.0
    L[2::4, 2::4] = 2.0
    L[3::4, 3::4] = 2.0
    L[2::4, ::4] = 3.0
    L[3::4, 1::4] = 3.0
    L[::2, 1::2] = 4.0
    L[1::2, ::2] = 4.0
    return L[None]                       # (1, h, w)


if __name__ == "__main__":
    key_coded, key_mask = jax.random.split(jax.random.PRNGKey(0))
    B, C, H, W = 2, 4, 16, 16
    coded = jax.random.uniform(key_coded, (B, C, H, W), jnp.float32,
                               minval=0.1, maxval=1.0)
    shutter_len = shutter_length_quad(H, W)          # (1, 16, 16), values {1,2,3,4}

    out = my_tree_multi_random_forward(coded, shutter_len)
    out = jax.block_until_ready(out)

    # --- check 1: kernel k-NN vs host brute force (per channel mask) -------- #
    for length in np.unique(shutter_len):
        mask = (shutter_len == length).astype(np.float32)
        idx, dist, fi, ui = find_idx(mask)
        fn = norm_coord(fi.astype(np.float32), W)
        un = norm_coord(ui.astype(np.float32), W)
        d2 = ((un[:, None, :].astype(np.float64) - fn[None, :, :]) ** 2).sum(-1)
        ref_idx = np.argsort(d2, axis=1, kind="stable")[:, :K]
        ref_dist = np.sqrt(np.take_along_axis(d2, ref_idx, axis=1))
        np.testing.assert_array_equal(idx, ref_idx.astype(np.int32))
        np.testing.assert_allclose(dist, ref_dist, rtol=1e-5, atol=1e-6)

    # --- check 2: multi-tile path (many u- and f-tiles, integer coords) ----- #
    big_mask = np.asarray(jax.random.uniform(key_mask, (64, 64)) > 0.5)
    fi = np.argwhere(big_mask).astype(np.float32)
    ui = np.argwhere(~big_mask).astype(np.float32)
    idx2, dist2 = knn_pallas(jnp.asarray(ui), jnp.asarray(fi),
                             tile_u=128, tile_f=256)
    idx2 = np.asarray(jax.block_until_ready(idx2))
    dist2 = np.asarray(jax.block_until_ready(dist2))
    d2 = ((ui[:, None, :].astype(np.float64) - fi[None, :, :]) ** 2).sum(-1)
    ref_idx = np.argsort(d2, axis=1, kind="stable")[:, :K]
    ref_dist = np.sqrt(np.take_along_axis(d2, ref_idx, axis=1))
    np.testing.assert_array_equal(idx2, ref_idx.astype(np.int32))
    np.testing.assert_allclose(dist2, ref_dist, rtol=1e-5, atol=1e-5)

    # --- check 3: end-to-end forward vs a host numpy reference -------------- #
    coded_np = np.asarray(coded)
    ref = np.zeros((B, C, H, W), np.float32)
    for i, length in enumerate(np.unique(shutter_len)):
        m = shutter_len[0] == length
        holed = coded_np[:, i] * m[None].astype(np.float32)
        fi = np.argwhere(m)
        ui = np.argwhere(~m)
        fn = norm_coord(fi.astype(np.float32), W)
        un = norm_coord(ui.astype(np.float32), W)
        d2 = ((un[:, None, :].astype(np.float64) - fn[None, :, :]) ** 2).sum(-1)
        ridx = np.argsort(d2, axis=1, kind="stable")[:, :K]
        rdist = np.sqrt(np.take_along_axis(d2, ridx, axis=1))
        wgt = 1.0 / rdist
        sel = fi[ridx]
        src = holed[:, sel[..., 0], sel[..., 1]]
        vals = (src * wgt[None]).sum(-1) / wgt.sum(-1)[None]
        filled = holed.copy()
        filled[:, ui[:, 0], ui[:, 1]] = vals
        ref[:, i] = filled
    np.testing.assert_allclose(np.asarray(out), ref, rtol=1e-4, atol=1e-4)

    print("KERNEL_OK")
</pallas_src>

<mosaic_0001>
module attributes {stable_mosaic.version = 11 : i64} {
  func.func @_knn_kernel(%arg0: i32, %arg1: i32, %arg2: memref<2x128xf32, #tpu.memory_space<vmem>>, %arg3: memref<128x2xf32, #tpu.memory_space<vmem>>, %arg4: memref<3x128xi32, #tpu.memory_space<vmem>>, %arg5: memref<3x128xf32, #tpu.memory_space<vmem>>, %arg6: memref<3x128xf32, #tpu.memory_space<vmem>>, %arg7: memref<3x128xi32, #tpu.memory_space<vmem>>) attributes {dimension_semantics = [#tpu.dimension_semantics<parallel>, #tpu.dimension_semantics<arbitrary>], iteration_bounds = array<i64: 2, 1>, scalar_prefetch = 0 : i64, scratch_operands = 2 : i64, tpu.core_type = #tpu.core_type<tc>, window_params = [{transform_indices = @transform_0, window_bounds = array<i64: 2, 128>}, {transform_indices = @transform_1, window_bounds = array<i64: 128, 2>}, {transform_indices = @transform_2, window_bounds = array<i64: 3, 128>}, {transform_indices = @transform_3, window_bounds = array<i64: 3, 128>}]} {
    %c0_i32 = arith.constant 0 : i32
    %0 = arith.cmpi eq, %arg1, %c0_i32 : i32
    %1 = arith.extui %0 : i1 to i32
    %c0_i32_0 = arith.constant 0 : i32
    %2 = arith.cmpi ne, %1, %c0_i32_0 : i32
    scf.if %2 {
      %cst_38 = arith.constant 0x7F800000 : f32
      %120 = vector.broadcast %cst_38 : f32 to vector<3x128xf32>
      %c0_39 = arith.constant 0 : index
      %c0_40 = arith.constant 0 : index
      %121 = vector.load %arg6[%c0_39, %c0_40] : memref<3x128xf32, #tpu.memory_space<vmem>>, vector<3x128xf32>
      tpu.vector_store %arg6[%c0_39, %c0_40], %120 {strides = array<i32>} : memref<3x128xf32, #tpu.memory_space<vmem>>, vector<3x128xf32>,
      %c0_i32_41 = arith.constant 0 : i32
      %122 = vector.broadcast %c0_i32_41 : i32 to vector<3x128xi32>
      %c0_42 = arith.constant 0 : index
      %c0_43 = arith.constant 0 : index
      %123 = vector.load %arg7[%c0_42, %c0_43] : memref<3x128xi32, #tpu.memory_space<vmem>>, vector<3x128xi32>
      tpu.vector_store %arg7[%c0_42, %c0_43], %122 {strides = array<i32>} : memref<3x128xi32, #tpu.memory_space<vmem>>, vector<3x128xi32>,
    } else {
    }
    %c0 = arith.constant 0 : index
    %c0_1 = arith.constant 0 : index
    %3 = vector.load %arg3[%c0, %c0_1] : memref<128x2xf32, #tpu.memory_space<vmem>>, vector<128x2xf32>
    %c0_2 = arith.constant 0 : index
    %c0_3 = arith.constant 0 : index
    %4 = vector.load %arg2[%c0_2, %c0_3] : memref<2x128xf32, #tpu.memory_space<vmem>>, vector<2x128xf32>
    %5 = vector.extract_strided_slice %3 {offsets = [0, 0], sizes = [128, 1], strides = [1, 1]} : vector<128x2xf32> to vector<128x1xf32>
    %6 = vector.extract_strided_slice %4 {offsets = [0, 0], sizes = [1, 128], strides = [1, 1]} : vector<2x128xf32> to vector<1x128xf32>
    %7 = vector.broadcast %5 : vector<128x1xf32> to vector<128x128xf32>
    %8 = vector.broadcast %6 : vector<1x128xf32> to vector<128x128xf32>
    %9 = arith.subf %7, %8 : vector<128x128xf32>
    %10 = vector.extract_strided_slice %3 {offsets = [0, 1], sizes = [128, 1], strides = [1, 1]} : vector<128x2xf32> to vector<128x1xf32>
    %11 = vector.extract_strided_slice %4 {offsets = [1, 0], sizes = [1, 128], strides = [1, 1]} : vector<2x128xf32> to vector<1x128xf32>
    %12 = vector.broadcast %10 : vector<128x1xf32> to vector<128x128xf32>
    %13 = vector.broadcast %11 : vector<1x128xf32> to vector<128x128xf32>
    %14 = arith.subf %12, %13 : vector<128x128xf32>
    %15 = arith.mulf %9, %9 : vector<128x128xf32>
    %16 = arith.mulf %14, %14 : vector<128x128xf32>
    %17 = arith.addf %15, %16 : vector<128x128xf32>
    %18 = tpu.iota {dimensions = array<i32: 0>} : vector<128x1xi32>
    %c128_i32 = arith.constant 128 : i32
    %19 = arith.muli %arg1, %c128_i32 : i32
    %c0_4 = arith.constant 0 : index
    %c0_5 = arith.constant 0 : index
    %20 = vector.load %arg6[%c0_4, %c0_5] : memref<3x128xf32, #tpu.memory_space<vmem>>, vector<1x128xf32>
    %c1 = arith.constant 1 : index
    %c0_6 = arith.constant 0 : index
    %21 = vector.load %arg6[%c1, %c0_6] : memref<3x128xf32, #tpu.memory_space<vmem>>, vector<1x128xf32>
    %c2 = arith.constant 2 : index
    %c0_7 = arith.constant 0 : index
    %22 = vector.load %arg6[%c2, %c0_7] : memref<3x128xf32, #tpu.memory_space<vmem>>, vector<1x128xf32>
    %c0_8 = arith.constant 0 : index
    %c0_9 = arith.constant 0 : index
    %23 = vector.load %arg7[%c0_8, %c0_9] : memref<3x128xi32, #tpu.memory_space<vmem>>, vector<1x128xi32>
    %c1_10 = arith.constant 1 : index
    %c0_11 = arith.constant 0 : index
    %24 = vector.load %arg7[%c1_10, %c0_11] : memref<3x128xi32, #tpu.memory_space<vmem>>, vector<1x128xi32>
    %c2_12 = arith.constant 2 : index
    %c0_13 = arith.constant 0 : index
    %25 = vector.load %arg7[%c2_12, %c0_13] : memref<3x128xi32, #tpu.memory_space<vmem>>, vector<1x128xi32>
    %cst = arith.constant dense<0x7F800000> : vector<128xf32>
    %26 = vector.multi_reduction <minimumf>, %17, %cst [0] : vector<128x128xf32> to vector<128xf32>
    %27 = vector.shape_cast %26 : vector<128xf32> to vector<1x128xf32>
    %28 = vector.broadcast %27 : vector<1x128xf32> to vector<128x128xf32>
    %29 = arith.cmpf oeq, %17, %28 : vector<128x128xf32>
    %c128_i32_14 = arith.constant 128 : i32
    %30 = vector.shape_cast %18 : vector<128x1xi32> to vector<128x1xi32>
    %31 = vector.broadcast %30 : vector<128x1xi32> to vector<128x128xi32>
    %32 = vector.broadcast %c128_i32_14 : i32 to vector<128x128xi32>
    %33 = arith.select %29, %31, %32 : vector<128x128xi1>, vector<128x128xi32>
    %cst_15 = arith.constant dense<2147483647> : vector<128xi32>
    %34 = vector.multi_reduction <minsi>, %33, %cst_15 [0] : vector<128x128xi32> to vector<128xi32>
    %35 = vector.shape_cast %34 : vector<128xi32> to vector<1x128xi32>
    %36 = vector.broadcast %18 : vector<128x1xi32> to vector<128x128xi32>
    %37 = vector.broadcast %35 : vector<1x128xi32> to vector<128x128xi32>
    %38 = arith.cmpi eq, %36, %37 : vector<128x128xi32>
    %cst_16 = arith.constant 0x7F800000 : f32
    %39 = vector.broadcast %cst_16 : f32 to vector<128x128xf32>
    %40 = arith.select %38, %39, %17 : vector<128x128xi1>, vector<128x128xf32>
    %41 = vector.broadcast %19 : i32 to vector<1x128xi32>
    %42 = arith.addi %35, %41 : vector<1x128xi32>
    %43 = arith.cmpf olt, %27, %20 : vector<1x128xf32>
    %44 = arith.cmpf olt, %27, %21 : vector<1x128xf32>
    %45 = arith.cmpf olt, %27, %22 : vector<1x128xf32>
    %46 = arith.select %43, %27, %20 : vector<1x128xi1>, vector<1x128xf32>
    %47 = arith.select %44, %27, %21 : vector<1x128xi1>, vector<1x128xf32>
    %48 = arith.select %43, %20, %47 : vector<1x128xi1>, vector<1x128xf32>
    %49 = arith.select %45, %27, %22 : vector<1x128xi1>, vector<1x128xf32>
    %50 = arith.select %44, %21, %49 : vector<1x128xi1>, vector<1x128xf32>
    %51 = arith.select %43, %42, %23 : vector<1x128xi1>, vector<1x128xi32>
    %52 = arith.select %44, %42, %24 : vector<1x128xi1>, vector<1x128xi32>
    %53 = arith.select %43, %23, %52 : vector<1x128xi1>, vector<1x128xi32>
    %54 = arith.select %45, %42, %25 : vector<1x128xi1>, vector<1x128xi32>
    %55 = arith.select %44, %24, %54 : vector<1x128xi1>, vector<1x128xi32>
    %cst_17 = arith.constant dense<0x7F800000> : vector<128xf32>
    %56 = vector.multi_reduction <minimumf>, %40, %cst_17 [0] : vector<128x128xf32> to vector<128xf32>
    %57 = vector.shape_cast %56 : vector<128xf32> to vector<1x128xf32>
    %58 = vector.broadcast %57 : vector<1x128xf32> to vector<128x128xf32>
    %59 = arith.cmpf oeq, %40, %58 : vector<128x128xf32>
    %c128_i32_18 = arith.constant 128 : i32
    %60 = vector.shape_cast %18 : vector<128x1xi32> to vector<128x1xi32>
    %61 = vector.broadcast %60 : vector<128x1xi32> to vector<128x128xi32>
    %62 = vector.broadcast %c128_i32_18 : i32 to vector<128x128xi32>
    %63 = arith.select %59, %61, %62 : vector<128x128xi1>, vector<128x128xi32>
    %cst_19 = arith.constant dense<2147483647> : vector<128xi32>
    %64 = vector.multi_reduction <minsi>, %63, %cst_19 [0] : vector<128x128xi32> to vector<128xi32>
    %65 = vector.shape_cast %64 : vector<128xi32> to vector<1x128xi32>
    %66 = vector.broadcast %18 : vector<128x1xi32> to vector<128x128xi32>
    %67 = vector.broadcast %65 : vector<1x128xi32> to vector<128x128xi32>
    %68 = arith.cmpi eq, %66, %67 : vector<128x128xi32>
    %cst_20 = arith.constant 0x7F800000 : f32
    %69 = vector.broadcast %cst_20 : f32 to vector<128x128xf32>
    %70 = arith.select %68, %69, %40 : vector<128x128xi1>, vector<128x128xf32>
    %71 = vector.broadcast %19 : i32 to vector<1x128xi32>
    %72 = arith.addi %65, %71 : vector<1x128xi32>
    %73 = arith.cmpf olt, %57, %46 : vector<1x128xf32>
    %74 = arith.cmpf olt, %57, %48 : vector<1x128xf32>
    %75 = arith.cmpf olt, %57, %50 : vector<1x128xf32>
    %76 = arith.select %73, %57, %46 : vector<1x128xi1>, vector<1x128xf32>
    %77 = arith.select %74, %57, %48 : vector<1x128xi1>, vector<1x128xf32>
    %78 = arith.select %73, %46, %77 : vector<1x128xi1>, vector<1x128xf32>
    %79 = arith.select %75, %57, %50 : vector<1x128xi1>, vector<1x128xf32>
    %80 = arith.select %74, %48, %79 : vector<1x128xi1>, vector<1x128xf32>
    %81 = arith.select %73, %72, %51 : vector<1x128xi1>, vector<1x128xi32>
    %82 = arith.select %74, %72, %53 : vector<1x128xi1>, vector<1x128xi32>
    %83 = arith.select %73, %51, %82 : vector<1x128xi1>, vector<1x128xi32>
    %84 = arith.select %75, %72, %55 : vector<1x128xi1>, vector<1x128xi32>
    %85 = arith.select %74, %53, %84 : vector<1x128xi1>, vector<1x128xi32>
    %cst_21 = arith.constant dense<0x7F800000> : vector<128xf32>
    %86 = vector.multi_reduction <minimumf>, %70, %cst_21 [0] : vector<128x128xf32> to vector<128xf32>
    %87 = vector.shape_cast %86 : vector<128xf32> to vector<1x128xf32>
    %88 = vector.broadcast %87 : vector<1x128xf32> to vector<128x128xf32>
    %89 = arith.cmpf oeq, %70, %88 : vector<128x128xf32>
    %c128_i32_22 = arith.constant 128 : i32
    %90 = vector.shape_cast %18 : vector<128x1xi32> to vector<128x1xi32>
    %91 = vector.broadcast %90 : vector<128x1xi32> to vector<128x128xi32>
    %92 = vector.broadcast %c128_i32_22 : i32 to vector<128x128xi32>
    %93 = arith.select %89, %91, %92 : vector<128x128xi1>, vector<128x128xi32>
    %cst_23 = arith.constant dense<2147483647> : vector<128xi32>
    %94 = vector.multi_reduction <minsi>, %93, %cst_23 [0] : vector<128x128xi32> to vector<128xi32>
    %95 = vector.shape_cast %94 : vector<128xi32> to vector<1x128xi32>
    %96 = vector.broadcast %19 : i32 to vector<1x128xi32>
    %97 = arith.addi %95, %96 : vector<1x128xi32>
    %98 = arith.cmpf olt, %87, %76 : vector<1x128xf32>
    %99 = arith.cmpf olt, %87, %78 : vector<1x128xf32>
    %100 = arith.cmpf olt, %87, %80 : vector<1x128xf32>
    %101 = arith.select %98, %87, %76 : vector<1x128xi1>, vector<1x128xf32>
    %102 = arith.select %99, %87, %78 : vector<1x128xi1>, vector<1x128xf32>
    %103 = arith.select %98, %76, %102 : vector<1x128xi1>, vector<1x128xf32>
    %104 = arith.select %100, %87, %80 : vector<1x128xi1>, vector<1x128xf32>
    %105 = arith.select %99, %78, %104 : vector<1x128xi1>, vector<1x128xf32>
    %106 = arith.select %98, %97, %81 : vector<1x128xi1>, vector<1x128xi32>
    %107 = arith.select %99, %97, %83 : vector<1x128xi1>, vector<1x128xi32>
    %108 = arith.select %98, %81, %107 : vector<1x128xi1>, vector<1x128xi32>
    %109 = arith.select %100, %97, %85 : vector<1x128xi1>, vector<1x128xi32>
    %110 = arith.select %99, %83, %109 : vector<1x128xi1>, vector<1x128xi32>
    %c0_24 = arith.constant 0 : index
    %c0_25 = arith.constant 0 : index
    %111 = vector.load %arg6[%c0_24, %c0_25] : memref<3x128xf32, #tpu.memory_space<vmem>>, vector<1x128xf32>
    tpu.vector_store %arg6[%c0_24, %c0_25], %101 {strides = array<i32>} : memref<3x128xf32, #tpu.memory_space<vmem>>, vector<1x128xf32>,
    %c1_26 = arith.constant 1 : index
    %c0_27 = arith.constant 0 : index
    %112 = vector.load %arg6[%c1_26, %c0_27] : memref<3x128xf32, #tpu.memory_space<vmem>>, vector<1x128xf32>
    tpu.vector_store %arg6[%c1_26, %c0_27], %103 {strides = array<i32>} : memref<3x128xf32, #tpu.memory_space<vmem>>, vector<1x128xf32>,
    %c2_28 = arith.constant 2 : index
    %c0_29 = arith.constant 0 : index
    %113 = vector.load %arg6[%c2_28, %c0_29] : memref<3x128xf32, #tpu.memory_space<vmem>>, vector<1x128xf32>
    tpu.vector_store %arg6[%c2_28, %c0_29], %105 {strides = array<i32>} : memref<3x128xf32, #tpu.memory_space<vmem>>, vector<1x128xf32>,
    %c0_30 = arith.constant 0 : index
    %c0_31 = arith.constant 0 : index
    %114 = vector.load %arg7[%c0_30, %c0_31] : memref<3x128xi32, #tpu.memory_space<vmem>>, vector<1x128xi32>
    tpu.vector_store %arg7[%c0_30, %c0_31], %106 {strides = array<i32>} : memref<3x128xi32, #tpu.memory_space<vmem>>, vector<1x128xi32>,
    %c1_32 = arith.constant 1 : index
    %c0_33 = arith.constant 0 : index
    %115 = vector.load %arg7[%c1_32, %c0_33] : memref<3x128xi32, #tpu.memory_space<vmem>>, vector<1x128xi32>
    tpu.vector_store %arg7[%c1_32, %c0_33], %108 {strides = array<i32>} : memref<3x128xi32, #tpu.memory_space<vmem>>, vector<1x128xi32>,
    %c2_34 = arith.constant 2 : index
    %c0_35 = arith.constant 0 : index
    %116 = vector.load %arg7[%c2_34, %c0_35] : memref<3x128xi32, #tpu.memory_space<vmem>>, vector<1x128xi32>
    tpu.vector_store %arg7[%c2_34, %c0_35], %110 {strides = array<i32>} : memref<3x128xi32, #tpu.memory_space<vmem>>, vector<1x128xi32>,
    %c0_i32_36 = arith.constant 0 : i32
    %117 = arith.cmpi eq, %arg1, %c0_i32_36 : i32
    %118 = arith.extui %117 : i1 to i32
    %c0_i32_37 = arith.constant 0 : i32
    %119 = arith.cmpi ne, %118, %c0_i32_37 : i32
    scf.if %119 {
      %c0_38 = arith.constant 0 : index
      %c0_39 = arith.constant 0 : index
      %120 = vector.load %arg4[%c0_38, %c0_39] : memref<3x128xi32, #tpu.memory_space<vmem>>, vector<1x128xi32>
      tpu.vector_store %arg4[%c0_38, %c0_39], %106 {strides = array<i32>} : memref<3x128xi32, #tpu.memory_space<vmem>>, vector<1x128xi32>,
      %c1_40 = arith.constant 1 : index
      %c0_41 = arith.constant 0 : index
      %121 = vector.load %arg4[%c1_40, %c0_41] : memref<3x128xi32, #tpu.memory_space<vmem>>, vector<1x128xi32>
      tpu.vector_store %arg4[%c1_40, %c0_41], %108 {strides = array<i32>} : memref<3x128xi32, #tpu.memory_space<vmem>>, vector<1x128xi32>,
      %c2_42 = arith.constant 2 : index
      %c0_43 = arith.constant 0 : index
      %122 = vector.load %arg4[%c2_42, %c0_43] : memref<3x128xi32, #tpu.memory_space<vmem>>, vector<1x128xi32>
      tpu.vector_store %arg4[%c2_42, %c0_43], %110 {strides = array<i32>} : memref<3x128xi32, #tpu.memory_space<vmem>>, vector<1x128xi32>,
      %123 = math.sqrt %101 : vector<1x128xf32>
      %c0_44 = arith.constant 0 : index
      %c0_45 = arith.constant 0 : index
      %124 = vector.load %arg5[%c0_44, %c0_45] : memref<3x128xf32, #tpu.memory_space<vmem>>, vector<1x128xf32>
      tpu.vector_store %arg5[%c0_44, %c0_45], %123 {strides = array<i32>} : memref<3x128xf32, #tpu.memory_space<vmem>>, vector<1x128xf32>,
      %125 = math.sqrt %103 : vector<1x128xf32>
      %c1_46 = arith.constant 1 : index
      %c0_47 = arith.constant 0 : index
      %126 = vector.load %arg5[%c1_46, %c0_47] : memref<3x128xf32, #tpu.memory_space<vmem>>, vector<1x128xf32>
      tpu.vector_store %arg5[%c1_46, %c0_47], %125 {strides = array<i32>} : memref<3x128xf32, #tpu.memory_space<vmem>>, vector<1x128xf32>,
      %127 = math.sqrt %105 : vector<1x128xf32>
      %c2_48 = arith.constant 2 : index
      %c0_49 = arith.constant 0 : index
      %128 = vector.load %arg5[%c2_48, %c0_49] : memref<3x128xf32, #tpu.memory_space<vmem>>, vector<1x128xf32>
      tpu.vector_store %arg5[%c2_48, %c0_49], %127 {strides = array<i32>} : memref<3x128xf32, #tpu.memory_space<vmem>>, vector<1x128xf32>,
    } else {
    }
    return
  }
  func.func @transform_0(%arg0: i32, %arg1: i32) -> (i32, i32) {
    %c0_i32 = arith.constant 0 : i32
    %c0_i32_0 = arith.constant 0 : i32
    return %c0_i32, %arg0 : i32, i32
  }
  func.func @transform_1(%arg0: i32, %arg1: i32) -> (i32, i32) {
    %c0_i32 = arith.constant 0 : i32
    %c0_i32_0 = arith.constant 0 : i32
    return %arg1, %c0_i32 : i32, i32
  }
  func.func @transform_2(%arg0: i32, %arg1: i32) -> (i32, i32) {
    %c0_i32 = arith.constant 0 : i32
    %c0_i32_0 = arith.constant 0 : i32
    return %c0_i32, %arg0 : i32, i32
  }
  func.func @transform_3(%arg0: i32, %arg1: i32) -> (i32, i32) {
    %c0_i32 = arith.constant 0 : i32
    %c0_i32_0 = arith.constant 0 : i32
    return %c0_i32, %arg0 : i32, i32
  }
}

</mosaic_0001>

<llo_original>
// kernel: tpu_custom_call.1
$region0: #{tpu_custom_call.1}
  #allocation0 [shape = 'u32[]', space=smem, size = 0x4, offset = 0x4, fixed_abs, tag = 'smem constant byte address 0x4 - core index']
  #allocation1 [shape = 'u32[72,128]{1,0:T(1,128)}', space=vmem, size = 0x9000, scoped, tag = 'internal scratch']
  #allocation2 [shape = 'f32[3,128]{1,0:T(4,128)}', space=vmem, size = 0x800, scoped, tag = 'scratch operand']
  #allocation3 [shape = 's32[3,128]{1,0:T(4,128)}', space=vmem, size = 0x800, scoped, tag = 'scratch operand']
  %s0 = inlined_call_operand.vmem [shape: f32[2,256], index: 0, kind: input, shape index: {}]
  %s1 = inlined_call_operand.vmem [shape: f32[128,2], index: 1, kind: input, shape index: {}]
  %s2 = inlined_call_operand.hbm [shape: s32[3,256], index: 2, kind: output, shape index: {0}]
  %s3 = inlined_call_operand.hbm [shape: f32[3,256], index: 3, kind: output, shape index: {1}]
  %4 = xla_tuple %s2, %s3
  %s5 = sld [smem:[#allocation0]]
  $region57: #{tpu_custom_call.1} parent=0
    _
  %s7 = ssub.s32 1, %s5
  %s8 = scalar_select 0, %s7, %s5
  $region1: #{tpu_custom_call.1} parent=0
    #allocation4 [shape = 'u8[4096]{0}', space=vmem, size = 0x1000, scoped, tag = 'output window, operand 0']
    #allocation5 [shape = 's32[2]{0}', space=sflag, size = 0x8, scoped, tag = 'scoped memory for tpu_custom_call.1']
    #allocation6 [shape = 'u8[4096]{0}', space=vmem, size = 0x1000, scoped, tag = 'output window, operand 1']
    #allocation7 [shape = 's32[2]{0}', space=sflag, size = 0x8, scoped, tag = 'scoped memory for tpu_custom_call.1']
    %9 = vsyncpa [#allocation5], 0
    %s10 = scalar_lea.sflag [#allocation5], 1
    %11 = vsyncpa %s10, 0
    %12 = vsyncpa [#allocation7], 0
    %s13 = scalar_lea.sflag [#allocation7], 1
    %14 = vsyncpa %s13, 0
    loop: start=0, step=1, limit=4
    $region2: #{tpu_custom_call.1} parent=1 // loop_pre_header
      _
    $region3: #{tpu_custom_call.1} parent=1 // loop_header
      %s16 = sphi 0, %s20
      %p17 = scmp.ge.s32.totalorder %s16, 4
      %s23 = sphi 0, %s35
      %s24 = sphi 0, %s31
      %s25 = sphi 0, %s23
      %s26 = sphi 0, %s24
      %s27 = sphi 0, %s25
      %s28 = sphi 0, %s26
      %s38 = sphi 0, %s40
      %s41 = sphi 0, %s38
      %s42 = sphi 0, %s41
      %s58 = sphi 0, %s42
      %s64 = sphi 0, %s66
      %s67 = sphi 0, %s64
      %s68 = sphi 0, %s67
      %s84 = sphi 0, %s68
      %s90 = sphi 0, %s92
      %s93 = sphi 0, %s90
      %s94 = sphi 0, %s93
      %s110 = sphi 0, %s94
      %s116 = sphi 0, %s118
      %s119 = sphi 0, %s116
      %s120 = sphi 0, %s119
      %s136 = sphi 0, %s120
    $region4: #{tpu_custom_call.1} parent=1 // loop_header_branch
      %19 = sbr.rel (%p17) target = $region8
    $region5: #{tpu_custom_call.1} parent=1 // loop_body
      %s21 = ssub.s32 %s16, 1
      %s22 = ssub.s32 %s16, 2
      %s29 = sadd.s32 1, %s24
      %p30 = scmp.ge.s32.totalorder %s29, 1
      %s31 = scalar_select %p30, 0, %s29
      %s32 = sadd.s32 1, %s23
      %s33 = scalar_select %p30, %s32, %s23
      %p34 = scmp.ge.s32.totalorder %s33, 2
      %s35 = scalar_select %p34, 0, %s33
      %s36 = ssub.s32 %s23, %s35
      %p37 = scmp.eq.s32.totalorder %s36, 0
      %s39 = sadd.s32 %s38, 1
      %s40 = scalar_select %p37, %s38, %s39
      %p43 = pneg %p37
      %p44 = scmp.eq.s32.totalorder %s16, 1
      %p45 = por %p43, %p44
      %p46 = scmp.ne.s32.totalorder %s38, %s41
      %p47 = scmp.eq.s32.totalorder %s16, 0
      %p48 = por %p46, %p47
      %p49 = scmp.ne.s32.totalorder %s38, %s41
      %p50 = scmp.eq.s32.totalorder %s21, 1
      %p51 = por %p49, %p50
      %p52 = scmp.ne.s32.totalorder %s41, %s42
      %p53 = scmp.eq.s32.totalorder %s21, 0
      %p54 = por %p52, %p53
      %p55 = scmp.ne.s32.totalorder %s41, %s42
      %p56 = scmp.eq.s32.totalorder %s22, 1
      %p57 = por %p55, %p56
      %p59 = scmp.ne.s32.totalorder %s42, %s58
      %p60 = scmp.eq.s32.totalorder %s22, 0
      %p61 = por %p59, %p60
      %s62 = ssub.s32 %s24, %s31
      %p63 = scmp.eq.s32.totalorder %s62, 0
      %s65 = sadd.s32 %s64, 1
      %s66 = scalar_select %p63, %s64, %s65
      %p69 = pneg %p63
      %p70 = scmp.eq.s32.totalorder %s16, 1
      %p71 = por %p69, %p70
      %p72 = scmp.ne.s32.totalorder %s64, %s67
      %p73 = scmp.eq.s32.totalorder %s16, 0
      %p74 = por %p72, %p73
      %p75 = scmp.ne.s32.totalorder %s64, %s67
      %p76 = scmp.eq.s32.totalorder %s21, 1
      %p77 = por %p75, %p76
      %p78 = scmp.ne.s32.totalorder %s67, %s68
      %p79 = scmp.eq.s32.totalorder %s21, 0
      %p80 = por %p78, %p79
      %p81 = scmp.ne.s32.totalorder %s67, %s68
      %p82 = scmp.eq.s32.totalorder %s22, 1
      %p83 = por %p81, %p82
      %p85 = scmp.ne.s32.totalorder %s68, %s84
      %p86 = scmp.eq.s32.totalorder %s22, 0
      %p87 = por %p85, %p86
      %s88 = ssub.s32 %s23, %s35
      %p89 = scmp.eq.s32.totalorder %s88, 0
      %s91 = sadd.s32 %s90, 1
      %s92 = scalar_select %p89, %s90, %s91
      %p95 = pneg %p89
      %p96 = scmp.eq.s32.totalorder %s16, 1
      %p97 = por %p95, %p96
      %p98 = scmp.ne.s32.totalorder %s90, %s93
      %p99 = scmp.eq.s32.totalorder %s16, 0
      %p100 = por %p98, %p99
      %p101 = scmp.ne.s32.totalorder %s90, %s93
      %p102 = scmp.eq.s32.totalorder %s21, 1
      %p103 = por %p101, %p102
      %p104 = scmp.ne.s32.totalorder %s93, %s94
      %p105 = scmp.eq.s32.totalorder %s21, 0
      %p106 = por %p104, %p105
      %p107 = scmp.ne.s32.totalorder %s93, %s94
      %p108 = scmp.eq.s32.totalorder %s22, 1
      %p109 = por %p107, %p108
      %p111 = scmp.ne.s32.totalorder %s94, %s110
      %p112 = scmp.eq.s32.totalorder %s22, 0
      %p113 = por %p111, %p112
      %s114 = ssub.s32 %s23, %s35
      %p115 = scmp.eq.s32.totalorder %s114, 0
      %s117 = sadd.s32 %s116, 1
      %s118 = scalar_select %p115, %s116, %s117
      %p121 = pneg %p115
      %p122 = scmp.eq.s32.totalorder %s16, 1
      %p123 = por %p121, %p122
      %p124 = scmp.ne.s32.totalorder %s116, %s119
      %p125 = scmp.eq.s32.totalorder %s16, 0
      %p126 = por %p124, %p125
      %p127 = scmp.ne.s32.totalorder %s116, %s119
      %p128 = scmp.eq.s32.totalorder %s21, 1
      %p129 = por %p127, %p128
      %p130 = scmp.ne.s32.totalorder %s119, %s120
      %p131 = scmp.eq.s32.totalorder %s21, 0
      %p132 = por %p130, %p131
      %p133 = scmp.ne.s32.totalorder %s119, %s120
      %p134 = scmp.eq.s32.totalorder %s22, 1
      %p135 = por %p133, %p134
      %p137 = scmp.ne.s32.totalorder %s120, %s136
      %p138 = scmp.eq.s32.totalorder %s22, 0
      %p139 = por %p137, %p138
      %p140 = scmp.le.s32.totalorder 1, %s16
      %p141 = scmp.lt.s32.totalorder %s16, 3
      %p142 = pnand %p140, %p141
      %p143 = pneg %p142
      // Predicated region
      $region9: #{tpu_custom_call.1} parent=5 // pred_check
        _
      $region10: #{tpu_custom_call.1} parent=5 // pred_check_branch
        %145 = sbr.rel (%p142) target = $region12
      $region11: #{tpu_custom_call.1} parent=5 // pred_region
        %s146 = ssub.s32 %s16, 1
        // Predicated region
        $region13: #{tpu_custom_call.1} parent=11 // pred_check
          %p147 = pneg %p80
        $region14: #{tpu_custom_call.1} parent=11 // pred_check_branch
          %149 = sbr.rel (%p147) target = $region16
        $region15: #{tpu_custom_call.1} parent=11 // pred_region
          %s150 = smul.u32 16, %s26
          %p151 = scmp.lt.s32.totalorder %s150, 15
          %s152 = scalar_select %p151, %s150, 15
          %s153 = smul.addr %s152, 8
          %s154 = scalar_lea.vmem %s1, %s153
          %s155 = smul.u32 16, %s26
        $region16: #{tpu_custom_call.1} parent=11 // pred_fallthru
          _
      $region12: #{tpu_custom_call.1} parent=5 // pred_fallthru
        _
      %p156 = scmp.lt.s32.totalorder %s16, 2
      // Predicated region
      $region17: #{tpu_custom_call.1} parent=5 // pred_check
        %p157 = pneg %p156
      $region18: #{tpu_custom_call.1} parent=5 // pred_check_branch
        %159 = sbr.rel (%p157) target = $region20
      $region19: #{tpu_custom_call.1} parent=5 // pred_region
        // Predicated region
        $region21: #{tpu_custom_call.1} parent=19 // pred_check
          %p160 = pneg %p48
        $region22: #{tpu_custom_call.1} parent=19 // pred_check_branch
          %162 = sbr.rel (%p160) target = $region24
        $region23: #{tpu_custom_call.1} parent=19 // pred_region
          %p163 = scmp.lt.s32.totalorder %s23, 1
          %s164 = scalar_select %p163, %s23, 1
          %s165 = smul.addr %s164, 2
          %s166 = scalar_lea.vmem %s0, %s165
        $region24: #{tpu_custom_call.1} parent=19 // pred_fallthru
          _
      $region20: #{tpu_custom_call.1} parent=5 // pred_fallthru
        _
      %p167 = scmp.le.s32.totalorder 1, %s16
      %p168 = scmp.lt.s32.totalorder %s16, 3
      %p169 = pnand %p167, %p168
      %p170 = pneg %p169
      // Predicated region
      $region25: #{tpu_custom_call.1} parent=5 // pred_check
        _
      $region26: #{tpu_custom_call.1} parent=5 // pred_check_branch
        %172 = sbr.rel (%p169) target = $region28
      $region27: #{tpu_custom_call.1} parent=5 // pred_region
        %s173 = ssub.s32 %s16, 1
        %p174 = scmp.lt.s32.totalorder %s25, 1
        %s175 = scalar_select %p174, %s25, 1
        %s176 = smul.addr %s175, 2
        %s177 = scalar_lea.vmem %s0, %s176
        %p178 = pneg %p54
        %p179 = pneg %p51
        %s180 = smul.u32 16, %s26
        %p181 = scmp.lt.s32.totalorder %s180, 15
        %s182 = scalar_select %p181, %s180, 15
        %s183 = smul.addr %s182, 8
        %s184 = scalar_lea.vmem %s1, %s183
        %p185 = pneg %p80
        %p186 = pneg %p77
        %p187 = pneg %p106
        %p188 = pneg %p103
        %s189 = sand.u32 %s93, 1
        %s190 = scalar_lea.sflag [#allocation5], %s189
        %s191 = sand.u32 %s93, 1
        %s192 = smul.addr %s191, 4
        %s193 = scalar_lea.vmem [#allocation4], %s192
        %p194 = pneg %p132
        %p195 = pneg %p129
        %s196 = sand.u32 %s119, 1
        %s197 = scalar_lea.sflag [#allocation7], %s196
        %s198 = sand.u32 %s119, 1
        %s199 = smul.addr %s198, 4
        %s200 = scalar_lea.vmem [#allocation6], %s199
        %p201 = scmp.lt.s32.totalorder %s25, 1
        %s202 = scalar_select %p201, %s25, 1
        %s203 = smul.addr %s202, 2
        %s204 = scalar_lea.vmem %s0, %s203
        %s205 = smul.u32 16, %s26
        %p206 = scmp.lt.s32.totalorder %s205, 15
        %s207 = scalar_select %p206, %s205, 15
        %s208 = smul.addr %s207, 8
        %s209 = scalar_lea.vmem %s1, %s208
        %s210 = smul.u32 16, %s26
        %p211 = scmp.eq.s32.totalorder %s26, 0
        // Predicated region
        $region29: #{tpu_custom_call.1} parent=27 // pred_check
          %p212 = pneg %p211
        $region30: #{tpu_custom_call.1} parent=27 // pred_check_branch
          %214 = sbr.rel (%p212) target = $region32
        $region31: #{tpu_custom_call.1} parent=27 // pred_region
          %215 = vst [vmem:[#allocation2] sm:$0x7] inf
          %216 = vst [vmem:[#allocation3] sm:$0x7] 0
        $region32: #{tpu_custom_call.1} parent=27 // pred_fallthru
          _
        %v217 = vld [vmem:[%s209] sm:$0xff]
        %v218 = vld [vmem:[%s209 + $0x8] sm:$0xff]
        %v219 = vld [vmem:[%s209 + $0x10] sm:$0xff]
        %v220 = vld [vmem:[%s209 + $0x18] sm:$0xff]
        %v221 = vld [vmem:[%s209 + $0x20] sm:$0xff]
        %v222 = vld [vmem:[%s209 + $0x28] sm:$0xff]
        %v223 = vld [vmem:[%s209 + $0x30] sm:$0xff]
        %v224 = vld [vmem:[%s209 + $0x38] sm:$0xff]
        %v225 = vld [vmem:[%s209 + $0x40] sm:$0xff]
        %v226 = vld [vmem:[%s209 + $0x48] sm:$0xff]
        %v227 = vld [vmem:[%s209 + $0x50] sm:$0xff]
        %v228 = vld [vmem:[%s209 + $0x58] sm:$0xff]
        %v229 = vld [vmem:[%s209 + $0x60] sm:$0xff]
        %v230 = vld [vmem:[%s209 + $0x68] sm:$0xff]
        %v231 = vld [vmem:[%s209 + $0x70] sm:$0xff]
        %v232 = vld [vmem:[%s209 + $0x78] sm:$0xff]
        %v233 = vld [vmem:[%s204] sm:$0x3]
        %235 = vset.pattern.permute.xlu0 0
        %236 = vperm.xlu0 %235, %v217
        %v237 = vpop.permute.xlu0 %236
        %240 = vset.pattern.permute.xlu0 0
        %241 = vperm.xlu0 %240, %v218
        %v242 = vpop.permute.xlu0 %241
        %245 = vset.pattern.permute.xlu0 0
        %246 = vperm.xlu0 %245, %v219
        %v247 = vpop.permute.xlu0 %246
        %250 = vset.pattern.permute.xlu0 0
        %251 = vperm.xlu0 %250, %v220
        %v252 = vpop.permute.xlu0 %251
        %255 = vset.pattern.permute.xlu0 0
        %256 = vperm.xlu0 %255, %v221
        %v257 = vpop.permute.xlu0 %256
        %260 = vset.pattern.permute.xlu0 0
        %261 = vperm.xlu0 %260, %v222
        %v262 = vpop.permute.xlu0 %261
        %265 = vset.pattern.permute.xlu0 0
        %266 = vperm.xlu0 %265, %v223
        %v267 = vpop.permute.xlu0 %266
        %270 = vset.pattern.permute.xlu0 0
        %271 = vperm.xlu0 %270, %v224
        %v272 = vpop.permute.xlu0 %271
        %275 = vset.pattern.permute.xlu0 0
        %276 = vperm.xlu0 %275, %v225
        %v277 = vpop.permute.xlu0 %276
        %280 = vset.pattern.permute.xlu0 0
        %281 = vperm.xlu0 %280, %v226
        %v282 = vpop.permute.xlu0 %281
        %285 = vset.pattern.permute.xlu0 0
        %286 = vperm.xlu0 %285, %v227
        %v287 = vpop.permute.xlu0 %286
        %290 = vset.pattern.permute.xlu0 0
        %291 = vperm.xlu0 %290, %v228
        %v292 = vpop.permute.xlu0 %291
        %295 = vset.pattern.permute.xlu0 0
        %296 = vperm.xlu0 %295, %v229
        %v297 = vpop.permute.xlu0 %296
        %300 = vset.pattern.permute.xlu0 0
        %301 = vperm.xlu0 %300, %v230
        %v302 = vpop.permute.xlu0 %301
        %305 = vset.pattern.permute.xlu0 0
        %306 = vperm.xlu0 %305, %v231
        %v307 = vpop.permute.xlu0 %306
        %310 = vset.pattern.permute.xlu0 0
        %311 = vperm.xlu0 %310, %v232
        %v312 = vpop.permute.xlu0 %311
        %v314 = vperm.slane %v233, 0
        %v315 = vsub.f32 %v237, %v314
        %v316 = vsub.f32 %v242, %v314
        %v317 = vsub.f32 %v247, %v314
        %v318 = vsub.f32 %v252, %v314
        %v319 = vsub.f32 %v257, %v314
        %v320 = vsub.f32 %v262, %v314
        %v321 = vsub.f32 %v267, %v314
        %v322 = vsub.f32 %v272, %v314
        %v323 = vsub.f32 %v277, %v314
        %v324 = vsub.f32 %v282, %v314
        %v325 = vsub.f32 %v287, %v314
        %v326 = vsub.f32 %v292, %v314
        %v327 = vsub.f32 %v297, %v314
        %v328 = vsub.f32 %v302, %v314
        %v329 = vsub.f32 %v307, %v314
        %v330 = vsub.f32 %v312, %v314
        %331 = vset.pattern.permute.xlu0 1
        %332 = vperm.xlu0 %331, %v217
        %v333 = vpop.permute.xlu0 %332
        %335 = vset.pattern.permute.xlu0 1
        %336 = vperm.xlu0 %335, %v218
        %v337 = vpop.permute.xlu0 %336
        %339 = vset.pattern.permute.xlu0 1
        %340 = vperm.xlu0 %339, %v219
        %v341 = vpop.permute.xlu0 %340
        %343 = vset.pattern.permute.xlu0 1
        %344 = vperm.xlu0 %343, %v220
        %v345 = vpop.permute.xlu0 %344
        %347 = vset.pattern.permute.xlu0 1
        %348 = vperm.xlu0 %347, %v221
        %v349 = vpop.permute.xlu0 %348
        %351 = vset.pattern.permute.xlu0 1
        %352 = vperm.xlu0 %351, %v222
        %v353 = vpop.permute.xlu0 %352
        %355 = vset.pattern.permute.xlu0 1
        %356 = vperm.xlu0 %355, %v223
        %v357 = vpop.permute.xlu0 %356
        %359 = vset.pattern.permute.xlu0 1
        %360 = vperm.xlu0 %359, %v224
        %v361 = vpop.permute.xlu0 %360
        %363 = vset.pattern.permute.xlu0 1
        %364 = vperm.xlu0 %363, %v225
        %v365 = vpop.permute.xlu0 %364
        %367 = vset.pattern.permute.xlu0 1
        %368 = vperm.xlu0 %367, %v226
        %v369 = vpop.permute.xlu0 %368
        %371 = vset.pattern.permute.xlu0 1
        %372 = vperm.xlu0 %371, %v227
        %v373 = vpop.permute.xlu0 %372
        %375 = vset.pattern.permute.xlu0 1
        %376 = vperm.xlu0 %375, %v228
        %v377 = vpop.permute.xlu0 %376
        %379 = vset.pattern.permute.xlu0 1
        %380 = vperm.xlu0 %379, %v229
        %v381 = vpop.permute.xlu0 %380
        %383 = vset.pattern.permute.xlu0 1
        %384 = vperm.xlu0 %383, %v230
        %v385 = vpop.permute.xlu0 %384
        %387 = vset.pattern.permute.xlu0 1
        %388 = vperm.xlu0 %387, %v231
        %v389 = vpop.permute.xlu0 %388
        %391 = vset.pattern.permute.xlu0 1
        %392 = vperm.xlu0 %391, %v232
        %v393 = vpop.permute.xlu0 %392
        %v395 = vperm.slane %v233, 1
        %v396 = vsub.f32 %v333, %v395
        %v397 = vsub.f32 %v337, %v395
        %v398 = vsub.f32 %v341, %v395
        %v399 = vsub.f32 %v345, %v395
        %v400 = vsub.f32 %v349, %v395
        %v401 = vsub.f32 %v353, %v395
        %v402 = vsub.f32 %v357, %v395
        %v403 = vsub.f32 %v361, %v395
        %v404 = vsub.f32 %v365, %v395
        %v405 = vsub.f32 %v369, %v395
        %v406 = vsub.f32 %v373, %v395
        %v407 = vsub.f32 %v377, %v395
        %v408 = vsub.f32 %v381, %v395
        %v409 = vsub.f32 %v385, %v395
        %v410 = vsub.f32 %v389, %v395
        %v411 = vsub.f32 %v393, %v395
        %v412 = vmul.f32 %v315, %v315
        %v413 = vmul.f32 %v316, %v316
        %v414 = vmul.f32 %v317, %v317
        %v415 = vmul.f32 %v318, %v318
        %v416 = vmul.f32 %v319, %v319
        %v417 = vmul.f32 %v320, %v320
        %v418 = vmul.f32 %v321, %v321
        %v419 = vmul.f32 %v322, %v322
        %v420 = vmul.f32 %v323, %v323
        %v421 = vmul.f32 %v324, %v324
        %v422 = vmul.f32 %v325, %v325
        %v423 = vmul.f32 %v326, %v326
        %v424 = vmul.f32 %v327, %v327
        %v425 = vmul.f32 %v328, %v328
        %v426 = vmul.f32 %v329, %v329
        %v427 = vmul.f32 %v330, %v330
        %v428 = vmul.f32 %v396, %v396
        %v429 = vmul.f32 %v397, %v397
        %v430 = vmul.f32 %v398, %v398
        %v431 = vmul.f32 %v399, %v399
        %v432 = vmul.f32 %v400, %v400
        %v433 = vmul.f32 %v401, %v401
        %v434 = vmul.f32 %v402, %v402
        %v435 = vmul.f32 %v403, %v403
        %v436 = vmul.f32 %v404, %v404
        %v437 = vmul.f32 %v405, %v405
        %v438 = vmul.f32 %v406, %v406
        %v439 = vmul.f32 %v407, %v407
        %v440 = vmul.f32 %v408, %v408
        %v441 = vmul.f32 %v409, %v409
        %v442 = vmul.f32 %v410, %v410
        %v443 = vmul.f32 %v411, %v411
        %v444 = vadd.f32 %v412, %v428
        %v445 = vadd.f32 %v413, %v429
        %v446 = vadd.f32 %v414, %v430
        %v447 = vadd.f32 %v415, %v431
        %v448 = vadd.f32 %v416, %v432
        %v449 = vadd.f32 %v417, %v433
        %v450 = vadd.f32 %v418, %v434
        %v451 = vadd.f32 %v419, %v435
        %v452 = vadd.f32 %v420, %v436
        %v453 = vadd.f32 %v421, %v437
        %v454 = vadd.f32 %v422, %v438
        %v455 = vadd.f32 %v423, %v439
        %v456 = vadd.f32 %v424, %v440
        %v457 = vadd.f32 %v425, %v441
        %v458 = vadd.f32 %v426, %v442
        %v459 = vadd.f32 %v427, %v443
        %v460 = vlaneseq
        %v461 = vshrl.u32 %v460, 7
        %v462 = vadd.s32 %v461, 8
        %v463 = vadd.s32 %v461, 16
        %v464 = vadd.s32 %v461, 24
        %v465 = vadd.s32 %v461, 32
        %v466 = vadd.s32 %v461, 40
        %v467 = vadd.s32 %v461, 48
        %v468 = vadd.s32 %v461, 56
        %v469 = vadd.s32 %v461, 64
        %v470 = vadd.s32 %v461, 72
        %v471 = vadd.s32 %v461, 80
        %v472 = vadd.s32 %v461, 88
        %v473 = vadd.s32 %v461, 96
        %v474 = vadd.s32 %v461, 104
        %v475 = vadd.s32 %v461, 112
        %v476 = vadd.s32 %v461, 120
        %s477 = smul.u32 %s26, 128
        %v478 = vld [vmem:[#allocation2] sm:$0x1]
        %v479 = vld [vmem:[#allocation2 + $0x1] sm:$0x1]
        %v480 = vld [vmem:[#allocation2 + $0x2] sm:$0x1]
        %v481 = vld [vmem:[#allocation3] sm:$0x1]
        %v482 = vld [vmem:[#allocation3 + $0x1] sm:$0x1]
        %v483 = vld [vmem:[#allocation3 + $0x2] sm:$0x1]
        %v484 = vmin.f32 %v444, %v448
        %v485 = vmin.f32 %v445, %v449
        %v486 = vmin.f32 %v446, %v450
        %v487 = vmin.f32 %v447, %v451
        %v488 = vmin.f32 %v484, %v452
        %v489 = vmin.f32 %v485, %v453
        %v490 = vmin.f32 %v486, %v454
        %v491 = vmin.f32 %v487, %v455
        %v492 = vmin.f32 %v488, %v456
        %v493 = vmin.f32 %v489, %v457
        %v494 = vmin.f32 %v490, %v458
        %v495 = vmin.f32 %v491, %v459
        %v496 = vmin.f32 %v492, %v493
        %v497 = vmin.f32 %v494, %v495
        %v498 = vmin.f32 %v496, %v497
        %v499 = vrot.slane %v498, 4
        %v500 = vmin.f32 %v498, %v499
        %v501 = vrot.slane %v500, 2
        %v502 = vmin.f32 %v500, %v501
        %v503 = vrot.slane %v502, 1
        %v504 = vmin.f32 %v502, %v503
        %vm505 = vcmp.eq.f32.partialorder %v444, %v504
        %vm506 = vcmp.eq.f32.partialorder %v445, %v504
        %vm507 = vcmp.eq.f32.partialorder %v446, %v504
        %vm508 = vcmp.eq.f32.partialorder %v447, %v504
        %vm509 = vcmp.eq.f32.partialorder %v448, %v504
        %vm510 = vcmp.eq.f32.partialorder %v449, %v504
        %vm511 = vcmp.eq.f32.partialorder %v450, %v504
        %vm512 = vcmp.eq.f32.partialorder %v451, %v504
        %vm513 = vcmp.eq.f32.partialorder %v452, %v504
        %vm514 = vcmp.eq.f32.partialorder %v453, %v504
        %vm515 = vcmp.eq.f32.partialorder %v454, %v504
        %vm516 = vcmp.eq.f32.partialorder %v455, %v504
        %vm517 = vcmp.eq.f32.partialorder %v456, %v504
        %vm518 = vcmp.eq.f32.partialorder %v457, %v504
        %vm519 = vcmp.eq.f32.partialorder %v458, %v504
        %vm520 = vcmp.eq.f32.partialorder %v459, %v504
        %v521 = vsel %vm505, %v461, 128
        %v522 = vsel %vm506, %v462, 128
        %v523 = vsel %vm507, %v463, 128
        %v524 = vsel %vm508, %v464, 128
        %v525 = vsel %vm509, %v465, 128
        %v526 = vsel %vm510, %v466, 128
        %v527 = vsel %vm511, %v467, 128
        %v528 = vsel %vm512, %v468, 128
        %v529 = vsel %vm513, %v469, 128
        %v530 = vsel %vm514, %v470, 128
        %v531 = vsel %vm515, %v471, 128
        %v532 = vsel %vm516, %v472, 128
        %v533 = vsel %vm517, %v473, 128
        %v534 = vsel %vm518, %v474, 128
        %v535 = vsel %vm519, %v475, 128
        %v536 = vsel %vm520, %v476, 128
        %vm537 = vcmp.lt.s32.totalorder %v521, %v525
        %v538 = vsel %vm537, %v521, %v525
        %vm539 = vcmp.lt.s32.totalorder %v522, %v526
        %v540 = vsel %vm539, %v522, %v526
        %vm541 = vcmp.lt.s32.totalorder %v523, %v527
        %v542 = vsel %vm541, %v523, %v527
        %vm543 = vcmp.lt.s32.totalorder %v524, %v528
        %v544 = vsel %vm543, %v524, %v528
        %vm545 = vcmp.lt.s32.totalorder %v538, %v529
        %v546 = vsel %vm545, %v538, %v529
        %vm547 = vcmp.lt.s32.totalorder %v540, %v530
        %v548 = vsel %vm547, %v540, %v530
        %vm549 = vcmp.lt.s32.totalorder %v542, %v531
        %v550 = vsel %vm549, %v542, %v531
        %vm551 = vcmp.lt.s32.totalorder %v544, %v532
        %v552 = vsel %vm551, %v544, %v532
        %vm553 = vcmp.lt.s32.totalorder %v546, %v533
        %v554 = vsel %vm553, %v546, %v533
        %vm555 = vcmp.lt.s32.totalorder %v548, %v534
        %v556 = vsel %vm555, %v548, %v534
        %vm557 = vcmp.lt.s32.totalorder %v550, %v535
        %v558 = vsel %vm557, %v550, %v535
        %vm559 = vcmp.lt.s32.totalorder %v552, %v536
        %v560 = vsel %vm559, %v552, %v536
        %vm561 = vcmp.lt.s32.totalorder %v554, %v556
        %v562 = vsel %vm561, %v554, %v556
        %vm563 = vcmp.lt.s32.totalorder %v558, %v560
        %v564 = vsel %vm563, %v558, %v560
        %vm565 = vcmp.lt.s32.totalorder %v562, %v564
        %v566 = vsel %vm565, %v562, %v564
        %v567 = vrot.slane %v566, 4
        %vm568 = vcmp.lt.s32.totalorder %v566, %v567
        %v569 = vsel %vm568, %v566, %v567
        %v570 = vrot.slane %v569, 2
        %vm571 = vcmp.lt.s32.totalorder %v569, %v570
        %v572 = vsel %vm571, %v569, %v570
        %v573 = vrot.slane %v572, 1
        %vm574 = vcmp.lt.s32.totalorder %v572, %v573
        %v575 = vsel %vm574, %v572, %v573
        %vm576 = vcmp.eq.s32.totalorder %v461, %v575
        %vm577 = vcmp.eq.s32.totalorder %v462, %v575
        %vm578 = vcmp.eq.s32.totalorder %v463, %v575
        %vm579 = vcmp.eq.s32.totalorder %v464, %v575
        %vm580 = vcmp.eq.s32.totalorder %v465, %v575
        %vm581 = vcmp.eq.s32.totalorder %v466, %v575
        %vm582 = vcmp.eq.s32.totalorder %v467, %v575
        %vm583 = vcmp.eq.s32.totalorder %v468, %v575
        %vm584 = vcmp.eq.s32.totalorder %v469, %v575
        %vm585 = vcmp.eq.s32.totalorder %v470, %v575
        %vm586 = vcmp.eq.s32.totalorder %v471, %v575
        %vm587 = vcmp.eq.s32.totalorder %v472, %v575
        %vm588 = vcmp.eq.s32.totalorder %v473, %v575
        %vm589 = vcmp.eq.s32.totalorder %v474, %v575
        %vm590 = vcmp.eq.s32.totalorder %v475, %v575
        %vm591 = vcmp.eq.s32.totalorder %v476, %v575
        %v592 = vsel %vm576, inf, %v444
        %v593 = vsel %vm577, inf, %v445
        %v594 = vsel %vm578, inf, %v446
        %v595 = vsel %vm579, inf, %v447
        %v596 = vsel %vm580, inf, %v448
        %v597 = vsel %vm581, inf, %v449
        %v598 = vsel %vm582, inf, %v450
        %v599 = vsel %vm583, inf, %v451
        %v600 = vsel %vm584, inf, %v452
        %v601 = vsel %vm585, inf, %v453
        %v602 = vsel %vm586, inf, %v454
        %v603 = vsel %vm587, inf, %v455
        %v604 = vsel %vm588, inf, %v456
        %v605 = vsel %vm589, inf, %v457
        %v606 = vsel %vm590, inf, %v458
        %v607 = vsel %vm591, inf, %v459
        %v608 = vstv %s477
        %v609 = vadd.s32 %v575, %v608
        %vm610 = vcmp.lt.f32.partialorder %v504, %v478
        %vm611 = vcmp.lt.f32.partialorder %v504, %v479
        %vm612 = vcmp.lt.f32.partialorder %v504, %v480
        %v613 = vsel %vm610, %v504, %v478
        %v614 = vsel %vm611, %v504, %v479
        %v615 = vsel %vm610, %v478, %v614
        %v616 = vsel %vm612, %v504, %v480
        %v617 = vsel %vm611, %v479, %v616
        %v618 = vsel %vm610, %v609, %v481
        %v619 = vsel %vm611, %v609, %v482
        %v620 = vsel %vm610, %v481, %v619
        %v621 = vsel %vm612, %v609, %v483
        %v622 = vsel %vm611, %v482, %v621
        %v623 = vmin.f32 %v592, %v596
        %v624 = vmin.f32 %v593, %v597
        %v625 = vmin.f32 %v594, %v598
        %v626 = vmin.f32 %v595, %v599
        %v627 = vmin.f32 %v623, %v600
        %v628 = vmin.f32 %v624, %v601
        %v629 = vmin.f32 %v625, %v602
        %v630 = vmin.f32 %v626, %v603
        %v631 = vmin.f32 %v627, %v604
        %v632 = vmin.f32 %v628, %v605
        %v633 = vmin.f32 %v629, %v606
        %v634 = vmin.f32 %v630, %v607
        %v635 = vmin.f32 %v631, %v632
        %v636 = vmin.f32 %v633, %v634
        %v637 = vmin.f32 %v635, %v636
        %v638 = vrot.slane %v637, 4
        %v639 = vmin.f32 %v637, %v638
        %v640 = vrot.slane %v639, 2
        %v641 = vmin.f32 %v639, %v640
        %v642 = vrot.slane %v641, 1
        %v643 = vmin.f32 %v641, %v642
        %vm644 = vcmp.eq.f32.partialorder %v592, %v643
        %vm645 = vcmp.eq.f32.partialorder %v593, %v643
        %vm646 = vcmp.eq.f32.partialorder %v594, %v643
        %vm647 = vcmp.eq.f32.partialorder %v595, %v643
        %vm648 = vcmp.eq.f32.partialorder %v596, %v643
        %vm649 = vcmp.eq.f32.partialorder %v597, %v643
        %vm650 = vcmp.eq.f32.partialorder %v598, %v643
        %vm651 = vcmp.eq.f32.partialorder %v599, %v643
        %vm652 = vcmp.eq.f32.partialorder %v600, %v643
        %vm653 = vcmp.eq.f32.partialorder %v601, %v643
        %vm654 = vcmp.eq.f32.partialorder %v602, %v643
        %vm655 = vcmp.eq.f32.partialorder %v603, %v643
        %vm656 = vcmp.eq.f32.partialorder %v604, %v643
        %vm657 = vcmp.eq.f32.partialorder %v605, %v643
        %vm658 = vcmp.eq.f32.partialorder %v606, %v643
        %vm659 = vcmp.eq.f32.partialorder %v607, %v643
        %v660 = vsel %vm644, %v461, 128
        %v661 = vsel %vm645, %v462, 128
        %v662 = vsel %vm646, %v463, 128
        %v663 = vsel %vm647, %v464, 128
        %v664 = vsel %vm648, %v465, 128
        %v665 = vsel %vm649, %v466, 128
        %v666 = vsel %vm650, %v467, 128
        %v667 = vsel %vm651, %v468, 128
        %v668 = vsel %vm652, %v469, 128
        %v669 = vsel %vm653, %v470, 128
        %v670 = vsel %vm654, %v471, 128
        %v671 = vsel %vm655, %v472, 128
        %v672 = vsel %vm656, %v473, 128
        %v673 = vsel %vm657, %v474, 128
        %v674 = vsel %vm658, %v475, 128
        %v675 = vsel %vm659, %v476, 128
        %vm676 = vcmp.lt.s32.totalorder %v660, %v664
        %v677 = vsel %vm676, %v660, %v664
        %vm678 = vcmp.lt.s32.totalorder %v661, %v665
        %v679 = vsel %vm678, %v661, %v665
        %vm680 = vcmp.lt.s32.totalorder %v662, %v666
        %v681 = vsel %vm680, %v662, %v666
        %vm682 = vcmp.lt.s32.totalorder %v663, %v667
        %v683 = vsel %vm682, %v663, %v667
        %vm684 = vcmp.lt.s32.totalorder %v677, %v668
        %v685 = vsel %vm684, %v677, %v668
        %vm686 = vcmp.lt.s32.totalorder %v679, %v669
        %v687 = vsel %vm686, %v679, %v669
        %vm688 = vcmp.lt.s32.totalorder %v681, %v670
        %v689 = vsel %vm688, %v681, %v670
        %vm690 = vcmp.lt.s32.totalorder %v683, %v671
        %v691 = vsel %vm690, %v683, %v671
        %vm692 = vcmp.lt.s32.totalorder %v685, %v672
        %v693 = vsel %vm692, %v685, %v672
        %vm694 = vcmp.lt.s32.totalorder %v687, %v673
        %v695 = vsel %vm694, %v687, %v673
        %vm696 = vcmp.lt.s32.totalorder %v689, %v674
        %v697 = vsel %vm696, %v689, %v674
        %vm698 = vcmp.lt.s32.totalorder %v691, %v675
        %v699 = vsel %vm698, %v691, %v675
        %vm700 = vcmp.lt.s32.totalorder %v693, %v695
        %v701 = vsel %vm700, %v693, %v695
        %vm702 = vcmp.lt.s32.totalorder %v697, %v699
        %v703 = vsel %vm702, %v697, %v699
        %vm704 = vcmp.lt.s32.totalorder %v701, %v703
        %v705 = vsel %vm704, %v701, %v703
        %v706 = vrot.slane %v705, 4
        %vm707 = vcmp.lt.s32.totalorder %v705, %v706
        %v708 = vsel %vm707, %v705, %v706
        %v709 = vrot.slane %v708, 2
        %vm710 = vcmp.lt.s32.totalorder %v708, %v709
        %v711 = vsel %vm710, %v708, %v709
        %v712 = vrot.slane %v711, 1
        %vm713 = vcmp.lt.s32.totalorder %v711, %v712
        %v714 = vsel %vm713, %v711, %v712
        %vm715 = vcmp.eq.s32.totalorder %v461, %v714
        %vm716 = vcmp.eq.s32.totalorder %v462, %v714
        %vm717 = vcmp.eq.s32.totalorder %v463, %v714
        %vm718 = vcmp.eq.s32.totalorder %v464, %v714
        %vm719 = vcmp.eq.s32.totalorder %v465, %v714
        %vm720 = vcmp.eq.s32.totalorder %v466, %v714
        %vm721 = vcmp.eq.s32.totalorder %v467, %v714
        %vm722 = vcmp.eq.s32.totalorder %v468, %v714
        %vm723 = vcmp.eq.s32.totalorder %v469, %v714
        %vm724 = vcmp.eq.s32.totalorder %v470, %v714
        %vm725 = vcmp.eq.s32.totalorder %v471, %v714
        %vm726 = vcmp.eq.s32.totalorder %v472, %v714
        %vm727 = vcmp.eq.s32.totalorder %v473, %v714
        %vm728 = vcmp.eq.s32.totalorder %v474, %v714
        %vm729 = vcmp.eq.s32.totalorder %v475, %v714
        %vm730 = vcmp.eq.s32.totalorder %v476, %v714
        %v731 = vsel %vm715, inf, %v592
        %v732 = vsel %vm716, inf, %v593
        %v733 = vsel %vm717, inf, %v594
        %v734 = vsel %vm718, inf, %v595
        %v735 = vsel %vm719, inf, %v596
        %v736 = vsel %vm720, inf, %v597
        %v737 = vsel %vm721, inf, %v598
        %v738 = vsel %vm722, inf, %v599
        %v739 = vsel %vm723, inf, %v600
        %v740 = vsel %vm724, inf, %v601
        %v741 = vsel %vm725, inf, %v602
        %v742 = vsel %vm726, inf, %v603
        %v743 = vsel %vm727, inf, %v604
        %v744 = vsel %vm728, inf, %v605
        %v745 = vsel %vm729, inf, %v606
        %v746 = vsel %vm730, inf, %v607
        %v747 = vadd.s32 %v714, %v608
        %vm748 = vcmp.lt.f32.partialorder %v643, %v613
        %vm749 = vcmp.lt.f32.partialorder %v643, %v615
        %vm750 = vcmp.lt.f32.partialorder %v643, %v617
        %v751 = vsel %vm748, %v643, %v613
        %v752 = vsel %vm749, %v643, %v615
        %v753 = vsel %vm748, %v613, %v752
        %v754 = vsel %vm750, %v643, %v617
        %v755 = vsel %vm749, %v615, %v754
        %v756 = vsel %vm748, %v747, %v618
        %v757 = vsel %vm749, %v747, %v620
        %v758 = vsel %vm748, %v618, %v757
        %v759 = vsel %vm750, %v747, %v622
        %v760 = vsel %vm749, %v620, %v759
        %v761 = vmin.f32 %v731, %v735
        %v762 = vmin.f32 %v732, %v736
        %v763 = vmin.f32 %v733, %v737
        %v764 = vmin.f32 %v734, %v738
        %v765 = vmin.f32 %v761, %v739
        %v766 = vmin.f32 %v762, %v740
        %v767 = vmin.f32 %v763, %v741
        %v768 = vmin.f32 %v764, %v742
        %v769 = vmin.f32 %v765, %v743
        %v770 = vmin.f32 %v766, %v744
        %v771 = vmin.f32 %v767, %v745
        %v772 = vmin.f32 %v768, %v746
        %v773 = vmin.f32 %v769, %v770
        %v774 = vmin.f32 %v771, %v772
        %v775 = vmin.f32 %v773, %v774
        %v776 = vrot.slane %v775, 4
        %v777 = vmin.f32 %v775, %v776
        %v778 = vrot.slane %v777, 2
        %v779 = vmin.f32 %v777, %v778
        %v780 = vrot.slane %v779, 1
        %v781 = vmin.f32 %v779, %v780
        %vm782 = vcmp.eq.f32.partialorder %v731, %v781
        %vm783 = vcmp.eq.f32.partialorder %v732, %v781
        %vm784 = vcmp.eq.f32.partialorder %v733, %v781
        %vm785 = vcmp.eq.f32.partialorder %v734, %v781
        %vm786 = vcmp.eq.f32.partialorder %v735, %v781
        %vm787 = vcmp.eq.f32.partialorder %v736, %v781
        %vm788 = vcmp.eq.f32.partialorder %v737, %v781
        %vm789 = vcmp.eq.f32.partialorder %v738, %v781
        %vm790 = vcmp.eq.f32.partialorder %v739, %v781
        %vm791 = vcmp.eq.f32.partialorder %v740, %v781
        %vm792 = vcmp.eq.f32.partialorder %v741, %v781
        %vm793 = vcmp.eq.f32.partialorder %v742, %v781
        %vm794 = vcmp.eq.f32.partialorder %v743, %v781
        %vm795 = vcmp.eq.f32.partialorder %v744, %v781
        %vm796 = vcmp.eq.f32.partialorder %v745, %v781
        %vm797 = vcmp.eq.f32.partialorder %v746, %v781
        %v798 = vsel %vm782, %v461, 128
        %v799 = vsel %vm783, %v462, 128
        %v800 = vsel %vm784, %v463, 128
        %v801 = vsel %vm785, %v464, 128
        %v802 = vsel %vm786, %v465, 128
        %v803 = vsel %vm787, %v466, 128
        %v804 = vsel %vm788, %v467, 128
        %v805 = vsel %vm789, %v468, 128
        %v806 = vsel %vm790, %v469, 128
        %v807 = vsel %vm791, %v470, 128
        %v808 = vsel %vm792, %v471, 128
        %v809 = vsel %vm793, %v472, 128
        %v810 = vsel %vm794, %v473, 128
        %v811 = vsel %vm795, %v474, 128
        %v812 = vsel %vm796, %v475, 128
        %v813 = vsel %vm797, %v476, 128
        %vm814 = vcmp.lt.s32.totalorder %v798, %v802
        %v815 = vsel %vm814, %v798, %v802
        %vm816 = vcmp.lt.s32.totalorder %v799, %v803
        %v817 = vsel %vm816, %v799, %v803
        %vm818 = vcmp.lt.s32.totalorder %v800, %v804
        %v819 = vsel %vm818, %v800, %v804
        %vm820 = vcmp.lt.s32.totalorder %v801, %v805
        %v821 = vsel %vm820, %v801, %v805
        %vm822 = vcmp.lt.s32.totalorder %v815, %v806
        %v823 = vsel %vm822, %v815, %v806
        %vm824 = vcmp.lt.s32.totalorder %v817, %v807
        %v825 = vsel %vm824, %v817, %v807
        %vm826 = vcmp.lt.s32.totalorder %v819, %v808
        %v827 = vsel %vm826, %v819, %v808
        %vm828 = vcmp.lt.s32.totalorder %v821, %v809
        %v829 = vsel %vm828, %v821, %v809
        %vm830 = vcmp.lt.s32.totalorder %v823, %v810
        %v831 = vsel %vm830, %v823, %v810
        %vm832 = vcmp.lt.s32.totalorder %v825, %v811
        %v833 = vsel %vm832, %v825, %v811
        %vm834 = vcmp.lt.s32.totalorder %v827, %v812
        %v835 = vsel %vm834, %v827, %v812
        %vm836 = vcmp.lt.s32.totalorder %v829, %v813
        %v837 = vsel %vm836, %v829, %v813
        %vm838 = vcmp.lt.s32.totalorder %v831, %v833
        %v839 = vsel %vm838, %v831, %v833
        %vm840 = vcmp.lt.s32.totalorder %v835, %v837
        %v841 = vsel %vm840, %v835, %v837
        %vm842 = vcmp.lt.s32.totalorder %v839, %v841
        %v843 = vsel %vm842, %v839, %v841
        %v844 = vrot.slane %v843, 4
        %vm845 = vcmp.lt.s32.totalorder %v843, %v844
        %v846 = vsel %vm845, %v843, %v844
        %v847 = vrot.slane %v846, 2
        %vm848 = vcmp.lt.s32.totalorder %v846, %v847
        %v849 = vsel %vm848, %v846, %v847
        %v850 = vrot.slane %v849, 1
        %vm851 = vcmp.lt.s32.totalorder %v849, %v850
        %v852 = vsel %vm851, %v849, %v850
        %v853 = vadd.s32 %v852, %v608
        %vm854 = vcmp.lt.f32.partialorder %v781, %v751
        %vm855 = vcmp.lt.f32.partialorder %v781, %v753
        %vm856 = vcmp.lt.f32.partialorder %v781, %v755
        %v857 = vsel %vm854, %v781, %v751
        %v858 = vsel %vm855, %v781, %v753
        %v859 = vsel %vm854, %v751, %v858
        %v860 = vsel %vm856, %v781, %v755
        %v861 = vsel %vm855, %v753, %v860
        %v862 = vsel %vm854, %v853, %v756
        %v863 = vsel %vm855, %v853, %v758
        %v864 = vsel %vm854, %v756, %v863
        %v865 = vsel %vm856, %v853, %v760
        %v866 = vsel %vm855, %v758, %v865
        %867 = vst [vmem:[#allocation2] sm:$0x1] %v857
        %868 = vst [vmem:[#allocation2 + $0x1] sm:$0x1] %v859
        %869 = vst [vmem:[#allocation2 + $0x2] sm:$0x1] %v861
        %870 = vst [vmem:[#allocation3] sm:$0x1] %v862
        %871 = vst [vmem:[#allocation3 + $0x1] sm:$0x1] %v864
        %872 = vst [vmem:[#allocation3 + $0x2] sm:$0x1] %v866
        // Predicated region
        $region33: #{tpu_custom_call.1} parent=27 // pred_check
          %p873 = pneg %p211
        $region34: #{tpu_custom_call.1} parent=27 // pred_check_branch
          %875 = sbr.rel (%p873) target = $region36
        $region35: #{tpu_custom_call.1} parent=27 // pred_region
          %876 = vst [vmem:[%s193] sm:$0x1] %v862
          %877 = vst [vmem:[%s193 + $0x1] sm:$0x1] %v864
          %878 = vst [vmem:[%s193 + $0x2] sm:$0x1] %v866
          %v879 = vrsqrt.pop %v857
          %v880 = vmul.f32 %v879, %v857
          %v881 = vmul.f32 %v880, %v879
          %v882 = vmul.f32 0.5, %v881
          %v883 = vsub.f32 1.5, %v882
          %v884 = vmul.f32 %v879, %v883
          %v885 = vmul.f32 %v857, %v884
          %vm886 = vcmp.eq.f32.partialorder %v857, inf
          %v887 = vsel %vm886, %v857, %v885
          %vm888 = vcmp.eq.f32.partialorder %v857, 0.0
          %v889 = vand.u32 %v857, 2147483648
          %v890 = vsel %vm888, %v889, %v887
          %891 = vst [vmem:[%s200] sm:$0x1] %v890
          %v892 = vrsqrt.pop %v859
          %v893 = vmul.f32 %v892, %v859
          %v894 = vmul.f32 %v893, %v892
          %v895 = vmul.f32 0.5, %v894
          %v896 = vsub.f32 1.5, %v895
          %v897 = vmul.f32 %v892, %v896
          %v898 = vmul.f32 %v859, %v897
          %vm899 = vcmp.eq.f32.partialorder %v859, inf
          %v900 = vsel %vm899, %v859, %v898
          %vm901 = vcmp.eq.f32.partialorder %v859, 0.0
          %v902 = vand.u32 %v859, 2147483648
          %v903 = vsel %vm901, %v902, %v900
          %904 = vst [vmem:[%s200 + $0x1] sm:$0x1] %v903
          %v905 = vrsqrt.pop %v861
          %v906 = vmul.f32 %v905, %v861
          %v907 = vmul.f32 %v906, %v905
          %v908 = vmul.f32 0.5, %v907
          %v909 = vsub.f32 1.5, %v908
          %v910 = vmul.f32 %v905, %v909
          %v911 = vmul.f32 %v861, %v910
          %vm912 = vcmp.eq.f32.partialorder %v861, inf
          %v913 = vsel %vm912, %v861, %v911
          %vm914 = vcmp.eq.f32.partialorder %v861, 0.0
          %v915 = vand.u32 %v861, 2147483648
          %v916 = vsel %vm914, %v915, %v913
          %917 = vst [vmem:[%s200 + $0x2] sm:$0x1] %v916
        $region36: #{tpu_custom_call.1} parent=27 // pred_fallthru
          _
        %s918 = sand.u32 %s93, 1
        %s919 = scalar_lea.sflag [#allocation5], %s918
        %s920 = sand.u32 %s93, 1
        %s921 = smul.addr %s920, 4
        %s922 = scalar_lea.vmem [#allocation4], %s921
        %s923 = sand.u32 %s119, 1
        %s924 = scalar_lea.sflag [#allocation7], %s923
        %s925 = sand.u32 %s119, 1
        %s926 = smul.addr %s925, 4
        %s927 = scalar_lea.vmem [#allocation6], %s926
        // Predicated region
        $region37: #{tpu_custom_call.1} parent=27 // pred_check
          %p928 = pneg %p103
        $region38: #{tpu_custom_call.1} parent=27 // pred_check_branch
          %930 = sbr.rel (%p928) target = $region40
        $region39: #{tpu_custom_call.1} parent=27 // pred_region
          %932 = vsyncadd %s919, 0
          %s933 = smul.addr %s25, 4
          %s934 = scalar_lea.hbm %s2, %s933
          %s936 = sshll.u32 %s922, 4
          %s937 = int_to_ptr.vmem [resolvable:$true] %s936
          %s938 = sshll.u32 %s934, 4
          %s939 = int_to_ptr.hbm [resolvable:$true] %s938
          %941 = dma.vmem_to_hbm [thread:$0]  %s937, 64, %s939, %s919
        $region40: #{tpu_custom_call.1} parent=27 // pred_fallthru
          _
        // Predicated region
        $region41: #{tpu_custom_call.1} parent=27 // pred_check
          %p942 = pneg %p129
        $region42: #{tpu_custom_call.1} parent=27 // pred_check_branch
          %944 = sbr.rel (%p942) target = $region44
        $region43: #{tpu_custom_call.1} parent=27 // pred_region
          %946 = vsyncadd %s924, 0
          %s947 = smul.addr %s25, 4
          %s948 = scalar_lea.hbm %s3, %s947
          %s950 = sshll.u32 %s927, 4
          %s951 = int_to_ptr.vmem [resolvable:$true] %s950
          %s952 = sshll.u32 %s948, 4
          %s953 = int_to_ptr.hbm [resolvable:$true] %s952
          %955 = dma.vmem_to_hbm [thread:$0]  %s951, 64, %s953, %s924
        $region44: #{tpu_custom_call.1} parent=27 // pred_fallthru
          _
      $region28: #{tpu_custom_call.1} parent=5 // pred_fallthru
        _
      %p956 = scmp.le.s32.totalorder 2, %s16
      // Predicated region
      $region45: #{tpu_custom_call.1} parent=5 // pred_check
        %p957 = pneg %p956
      $region46: #{tpu_custom_call.1} parent=5 // pred_check_branch
        %959 = sbr.rel (%p957) target = $region48
      $region47: #{tpu_custom_call.1} parent=5 // pred_region
        %s960 = ssub.s32 %s16, 2
        // Predicated region
        $region49: #{tpu_custom_call.1} parent=47 // pred_check
          %p961 = pneg %p109
        $region50: #{tpu_custom_call.1} parent=47 // pred_check_branch
          %963 = sbr.rel (%p961) target = $region52
        $region51: #{tpu_custom_call.1} parent=47 // pred_region
          %s964 = sand.u32 %s94, 1
          %s965 = scalar_lea.sflag [#allocation5], %s964
          %s966 = sand.u32 %s94, 1
          %s967 = smul.addr %s966, 4
          %s968 = scalar_lea.vmem [#allocation4], %s967
          %970 = dma.done %s965, 64
        $region52: #{tpu_custom_call.1} parent=47 // pred_fallthru
          _
        // Predicated region
        $region53: #{tpu_custom_call.1} parent=47 // pred_check
          %p971 = pneg %p135
        $region54: #{tpu_custom_call.1} parent=47 // pred_check_branch
          %973 = sbr.rel (%p971) target = $region56
        $region55: #{tpu_custom_call.1} parent=47 // pred_region
          %s974 = sand.u32 %s120, 1
          %s975 = scalar_lea.sflag [#allocation7], %s974
          %s976 = sand.u32 %s120, 1
          %s977 = smul.addr %s976, 4
          %s978 = scalar_lea.vmem [#allocation6], %s977
          %980 = dma.done %s975, 64
        $region56: #{tpu_custom_call.1} parent=47 // pred_fallthru
          _
      $region48: #{tpu_custom_call.1} parent=5 // pred_fallthru
        _
    $region6: #{tpu_custom_call.1} parent=1 // loop_footer
      %s20 = sadd.s32 1, %s16
    $region7: #{tpu_custom_call.1} parent=1 // loop_footer_branch
      %15 = sbr.rel target = $region3
    $region8: #{tpu_custom_call.1} parent=1 // loop_exit
      _
    %981 = vsyncpa [#allocation5], 1
    %s982 = scalar_lea.sflag [#allocation5], 1
    %983 = vsyncpa %s982, 1
    %984 = vsyncpa [#allocation7], 1
    %s985 = scalar_lea.sflag [#allocation7], 1
    %986 = vsyncpa %s985, 1

</llo_original>
